<compile_context>
chip_gen: v7x
topology: tpu7x:2x2x1
jax: 0.10.0
libtpu: 0.0.40
codegen_flags: <defaults>
</compile_context>

<pallas_src>
import math

import jax
import jax.numpy as jnp
from jax.experimental import pallas as pl
from jax.experimental.pallas import tpu as pltpu


def _round_up(x: int, m: int) -> int:
    return ((x + m - 1) // m) * m


def _vmem_budget_bytes() -> int:
    """Per-TensorCore VMEM budget with headroom; conservative fallback."""
    cap = 64 * 1024 * 1024  # v7x per-TC VMEM (smallest of v5e/v6e/v7x)
    try:
        info = pltpu.get_tpu_info()
        cap = int(getattr(info, "vmem_capacity_bytes", cap)) or cap
    except Exception:
        pass
    return int(cap * 0.85)


def mlp_kernel(x_ref, w1_ref, b1_ref, w2_ref, b2_ref, o_ref):
    # Cast the f32 input tile to the (bf16) matmul dtype on the VPU.
    x = x_ref[...].astype(w1_ref.dtype)

    # fc1: (tm, C_in) @ (C_in, hidden) -> f32 accumulation on the MXU.
    h = jnp.dot(x, w1_ref[...], preferred_element_type=jnp.float32)
    h = h + b1_ref[...]  # (1, hidden) broadcasts over rows, f32

    # Exact GELU (PyTorch nn.GELU default, approximate='none'), in f32.
    h = 0.5 * h * (1.0 + jax.lax.erf(h * (1.0 / math.sqrt(2.0))))

    # Dropout with p=0.0 is the identity (module default).
    # TODO(synk): dropout with p > 0 (training mode) is not implemented here.

    # fc2: (tm, hidden) @ (hidden, C_out), f32 accumulation, then bias + cast.
    o = jnp.dot(h.astype(w2_ref.dtype), w2_ref[...],
                preferred_element_type=jnp.float32)
    o_ref[...] = (o + b2_ref[...]).astype(o_ref.dtype)


def mlp_pallas(x, w1, b1, w2, b2, *, tile_m=512, compute_dtype=jnp.bfloat16):
    """x: (B, H, W, C_in) -> (B, H, W, C_out). Weights stored as (in, out)."""
    B, H, W, C_in = x.shape
    hidden = w1.shape[1]
    C_out = w2.shape[1]
    out_dtype = x.dtype
    M = B * H * W

    # Lane-dense padding: channel axes -> multiples of 128 (unmasked stores).
    C_in_p = _round_up(C_in, 128)
    hid_p = _round_up(hidden, 128)
    C_out_p = _round_up(C_out, 128)

    xb = jnp.dtype(x.dtype).itemsize
    wb = jnp.dtype(compute_dtype).itemsize
    ob = jnp.dtype(out_dtype).itemsize

    # --- VMEM-aware M tile selection (weights are resident for the whole grid).
    budget = _vmem_budget_bytes()
    weight_bytes = 2 * (C_in_p * hid_p + hid_p * C_out_p) * wb  # double-buffered alloc
    bias_bytes = 2 * (hid_p + C_out_p) * 4
    per_row = (2 * C_in_p * xb          # x tile (double-buffered, f32)
               + 2 * C_out_p * ob       # out tile (double-buffered)
               + C_in_p * wb            # bf16 cast of the x tile
               + hid_p * (4 + wb)       # f32 GELU intermediate + bf16 copy
               + C_out_p * 4)           # f32 fc2 result before cast
    fixed = weight_bytes + bias_bytes
    avail = max(budget - fixed, 0)
    tm_fit = max((avail // per_row) // 8 * 8, 8)
    # TODO(synk): for weights too large to be VMEM-resident (fixed > budget),
    # a hidden-reduction grid-axis variant would be needed; typical vmamba
    # widths (C<=1024, hidden=4C) fit on all of v5e/v6e/v7x.
    tm = int(min(tile_m, tm_fit, _round_up(M, 8)))
    M_p = _round_up(M, tm)

    est = fixed + tm * per_row
    vmem_limit = int(min(budget, max(int(1.5 * est), 32 * 1024 * 1024)))

    # --- One-time weight/bias padding + cast (cheap; zero padding is exact:
    # padded hidden cols give gelu(b1=0-pad? no: gelu of 0 rows) -> the padded
    # hidden columns of w1 and b1 are zero, gelu(0)=0, and they hit zero rows
    # of w2; padded C_out columns are sliced off; padded M rows are sliced off).
    w1_p = jnp.pad(w1, ((0, C_in_p - C_in), (0, hid_p - hidden))).astype(compute_dtype)
    w2_p = jnp.pad(w2, ((0, hid_p - hidden), (0, C_out_p - C_out))).astype(compute_dtype)
    b1_p = jnp.pad(b1, (0, hid_p - hidden)).astype(jnp.float32).reshape(1, hid_p)
    b2_p = jnp.pad(b2, (0, C_out_p - C_out)).astype(jnp.float32).reshape(1, C_out_p)

    # --- Input: keep original dtype (cast per tile in-kernel); pad only if needed.
    x2d = x.reshape(M, C_in)
    if (M_p - M) or (C_in_p - C_in):
        x2d = jnp.pad(x2d, ((0, M_p - M), (0, C_in_p - C_in)))

    grid = (M_p // tm,)

    cost = pl.CostEstimate(
        flops=2 * M * (C_in * hidden + hidden * C_out),
        transcendentals=M * hidden,  # one erf per hidden activation
        bytes_accessed=(M * C_in * xb
                        + (C_in_p * hid_p + hid_p * C_out_p) * wb
                        + (hid_p + C_out_p) * 4
                        + M * C_out * ob),
    )

    out2d = pl.pallas_call(
        mlp_kernel,
        out_shape=jax.ShapeDtypeStruct((M_p, C_out_p), out_dtype),
        grid_spec=pltpu.PrefetchScalarGridSpec(
            num_scalar_prefetch=0,
            grid=grid,
            in_specs=[
                pl.BlockSpec((tm, C_in_p), lambda i: (i, 0)),
                # Constant-index full blocks: DMA'd once, VMEM-resident.
                pl.BlockSpec((C_in_p, hid_p), lambda i: (0, 0)),
                pl.BlockSpec((1, hid_p), lambda i: (0, 0)),
                pl.BlockSpec((hid_p, C_out_p), lambda i: (0, 0)),
                pl.BlockSpec((1, C_out_p), lambda i: (0, 0)),
            ],
            out_specs=pl.BlockSpec((tm, C_out_p), lambda i: (i, 0)),
        ),
        compiler_params=pltpu.CompilerParams(
            dimension_semantics=("parallel",),
            vmem_limit_bytes=vmem_limit,
        ),
        cost_estimate=cost,
    )(x2d, w1_p, b1_p, w2_p, b2_p)

    return out2d[:M, :C_out].reshape(B, H, W, C_out)


def mlp_reference(x, w1, b1, w2, b2):
    h = jnp.einsum("bhwc,cd->bhwd", x, w1) + b1
    h = jax.nn.gelu(h, approximate=False)
    o = jnp.einsum("bhwd,de->bhwe", h, w2) + b2
    return o


if __name__ == "__main__":
    # Small shapes consistent with the module's forward (channels-last NHWC).
    B, H, W = 2, 8, 8
    in_features = 16
    hidden_features = 32
    out_features = 16

    key = jax.random.PRNGKey(0)
    k_x, k_w1, k_b1, k_w2, k_b2 = jax.random.split(key, 5)

    x = jax.random.normal(k_x, (B, H, W, in_features), dtype=jnp.float32)

    # Deterministic parameter init (mimicking nn.Linear's uniform fan-in init).
    bound1 = 1.0 / math.sqrt(in_features)
    w1 = jax.random.uniform(k_w1, (in_features, hidden_features),
                            minval=-bound1, maxval=bound1, dtype=jnp.float32)
    b1 = jax.random.uniform(k_b1, (hidden_features,),
                            minval=-bound1, maxval=bound1, dtype=jnp.float32)
    bound2 = 1.0 / math.sqrt(hidden_features)
    w2 = jax.random.uniform(k_w2, (hidden_features, out_features),
                            minval=-bound2, maxval=bound2, dtype=jnp.float32)
    b2 = jax.random.uniform(k_b2, (out_features,),
                            minval=-bound2, maxval=bound2, dtype=jnp.float32)

    out = mlp_pallas(x, w1, b1, w2, b2)
    out = jax.block_until_ready(out)

    ref = mlp_reference(x, w1, b1, w2, b2)
    assert out.shape == (B, H, W, out_features)
    # bf16 matmul inputs with f32 accumulation -> loosened tolerance.
    assert jnp.allclose(out, ref, atol=2e-2, rtol=2e-2), "mismatch vs reference"

    print("KERNEL_OK")
</pallas_src>

<mosaic_0001>
module attributes {stable_mosaic.version = 11 : i64} {
  func.func @mlp_kernel(%arg0: i32, %arg1: memref<128x128xf32, #tpu.memory_space<vmem>>, %arg2: memref<128x128xbf16, #tpu.memory_space<vmem>>, %arg3: memref<1x128xf32, #tpu.memory_space<vmem>>, %arg4: memref<128x128xbf16, #tpu.memory_space<vmem>>, %arg5: memref<1x128xf32, #tpu.memory_space<vmem>>, %arg6: memref<128x128xf32, #tpu.memory_space<vmem>>) attributes {dimension_semantics = [#tpu.dimension_semantics<parallel>], iteration_bounds = array<i64: 1>, scalar_prefetch = 0 : i64, scratch_operands = 0 : i64, tpu.core_type = #tpu.core_type<tc>, window_params = [{transform_indices = @transform_0, window_bounds = array<i64: 128, 128>}, {pipeline_mode = #tpu.pipeline_mode<synchronous>, transform_indices = @transform_1, window_bounds = array<i64: 128, 128>}, {pipeline_mode = #tpu.pipeline_mode<synchronous>, transform_indices = @transform_2, window_bounds = array<i64: 1, 128>}, {pipeline_mode = #tpu.pipeline_mode<synchronous>, transform_indices = @transform_3, window_bounds = array<i64: 128, 128>}, {pipeline_mode = #tpu.pipeline_mode<synchronous>, transform_indices = @transform_4, window_bounds = array<i64: 1, 128>}, {transform_indices = @transform_5, window_bounds = array<i64: 128, 128>}]} {
    %c0 = arith.constant 0 : index
    %c0_0 = arith.constant 0 : index
    %0 = vector.load %arg1[%c0, %c0_0] : memref<128x128xf32, #tpu.memory_space<vmem>>, vector<128x128xf32>
    %1 = arith.truncf %0 : vector<128x128xf32> to vector<128x128xbf16>
    %c0_1 = arith.constant 0 : index
    %c0_2 = arith.constant 0 : index
    %2 = vector.load %arg2[%c0_1, %c0_2] : memref<128x128xbf16, #tpu.memory_space<vmem>>, vector<128x128xbf16>
    %cst = arith.constant dense<0.000000e+00> : vector<128x128xf32>
    %3 = tpu.matmul %1, %2, %cst {dimension_numbers = #tpu.dot_dimension_numbers<[1], [0], [0], [1], [0, 0, 1, 1], [], []>} : vector<128x128xbf16>, vector<128x128xbf16>, vector<128x128xf32> -> vector<128x128xf32>
    %c0_3 = arith.constant 0 : index
    %c0_4 = arith.constant 0 : index
    %4 = vector.load %arg3[%c0_3, %c0_4] : memref<1x128xf32, #tpu.memory_space<vmem>>, vector<1x128xf32>
    %5 = vector.broadcast %4 : vector<1x128xf32> to vector<128x128xf32>
    %6 = arith.addf %3, %5 : vector<128x128xf32>
    %cst_5 = arith.constant 5.000000e-01 : f32
    %7 = vector.broadcast %cst_5 : f32 to vector<128x128xf32>
    %8 = arith.mulf %7, %6 : vector<128x128xf32>
    %cst_6 = arith.constant 0.707106769 : f32
    %9 = vector.broadcast %cst_6 : f32 to vector<128x128xf32>
    %10 = arith.mulf %6, %9 : vector<128x128xf32>
    %11 = math.erf %10 : vector<128x128xf32>
    %cst_7 = arith.constant 1.000000e+00 : f32
    %12 = vector.broadcast %cst_7 : f32 to vector<128x128xf32>
    %13 = arith.addf %12, %11 : vector<128x128xf32>
    %14 = arith.mulf %8, %13 : vector<128x128xf32>
    %15 = arith.truncf %14 : vector<128x128xf32> to vector<128x128xbf16>
    %c0_8 = arith.constant 0 : index
    %c0_9 = arith.constant 0 : index
    %16 = vector.load %arg4[%c0_8, %c0_9] : memref<128x128xbf16, #tpu.memory_space<vmem>>, vector<128x128xbf16>
    %cst_10 = arith.constant dense<0.000000e+00> : vector<128x128xf32>
    %17 = tpu.matmul %15, %16, %cst_10 {dimension_numbers = #tpu.dot_dimension_numbers<[1], [0], [0], [1], [0, 0, 1, 1], [], []>} : vector<128x128xbf16>, vector<128x128xbf16>, vector<128x128xf32> -> vector<128x128xf32>
    %c0_11 = arith.constant 0 : index
    %c0_12 = arith.constant 0 : index
    %18 = vector.load %arg5[%c0_11, %c0_12] : memref<1x128xf32, #tpu.memory_space<vmem>>, vector<1x128xf32>
    %19 = vector.broadcast %18 : vector<1x128xf32> to vector<128x128xf32>
    %20 = arith.addf %17, %19 : vector<128x128xf32>
    %c0_13 = arith.constant 0 : index
    %c0_14 = arith.constant 0 : index
    %21 = vector.load %arg6[%c0_13, %c0_14] : memref<128x128xf32, #tpu.memory_space<vmem>>, vector<128x128xf32>
    tpu.vector_store %arg6[%c0_13, %c0_14], %20 {strides = array<i32>} : memref<128x128xf32, #tpu.memory_space<vmem>>, vector<128x128xf32>,
    return
  }
  func.func @transform_0(%arg0: i32) -> (i32, i32) {
    %c0_i32 = arith.constant 0 : i32
    %c0_i32_0 = arith.constant 0 : i32
    return %arg0, %c0_i32 : i32, i32
  }
  func.func @transform_1(%arg0: i32) -> (i32, i32) {
    %c0_i32 = arith.constant 0 : i32
    %c0_i32_0 = arith.constant 0 : i32
    %c0_i32_1 = arith.constant 0 : i32
    return %c0_i32, %c0_i32_0 : i32, i32
  }
  func.func @transform_2(%arg0: i32) -> (i32, i32) {
    %c0_i32 = arith.constant 0 : i32
    %c0_i32_0 = arith.constant 0 : i32
    %c0_i32_1 = arith.constant 0 : i32
    return %c0_i32, %c0_i32_0 : i32, i32
  }
  func.func @transform_3(%arg0: i32) -> (i32, i32) {
    %c0_i32 = arith.constant 0 : i32
    %c0_i32_0 = arith.constant 0 : i32
    %c0_i32_1 = arith.constant 0 : i32
    return %c0_i32, %c0_i32_0 : i32, i32
  }
  func.func @transform_4(%arg0: i32) -> (i32, i32) {
    %c0_i32 = arith.constant 0 : i32
    %c0_i32_0 = arith.constant 0 : i32
    %c0_i32_1 = arith.constant 0 : i32
    return %c0_i32, %c0_i32_0 : i32, i32
  }
  func.func @transform_5(%arg0: i32) -> (i32, i32) {
    %c0_i32 = arith.constant 0 : i32
    %c0_i32_0 = arith.constant 0 : i32
    return %arg0, %c0_i32 : i32, i32
  }
}

</mosaic_0001>

<llo_original>
// kernel: tpu_custom_call.1
$region0: #{tpu_custom_call.1}
  #allocation0 [shape = 'u32[]', space=smem, size = 0x4, offset = 0x4, fixed_abs, tag = 'smem constant byte address 0x4 - core index']
  #allocation1 [shape = 'u32[144,128]{1,0:T(1,128)}', space=vmem, size = 0x12000, scoped, tag = 'internal scratch']
  %s0 = inlined_call_operand.hbm [shape: f32[128,128], index: 0, kind: input, shape index: {}]
  %s1 = inlined_call_operand.hbm [shape: bf16[128,128], index: 1, kind: input, shape index: {}]
  %s2 = inlined_call_operand.vmem [shape: f32[1,128], index: 2, kind: input, shape index: {}]
  %s3 = inlined_call_operand.hbm [shape: bf16[128,128], index: 3, kind: input, shape index: {}]
  %s4 = inlined_call_operand.vmem [shape: f32[1,128], index: 4, kind: input, shape index: {}]
  %s5 = inlined_call_operand.hbm [shape: f32[128,128], index: 5, kind: output, shape index: {}]
  %s6 = sld [smem:[#allocation0]]
  $region42: #{tpu_custom_call.1} parent=0
    _
  %s8 = ssub.s32 1, %s6
  %s9 = scalar_select 0, %s8, %s6
  $region1: #{tpu_custom_call.1} parent=0
    #allocation2 [shape = 'u8[65536]{0}', space=vmem, size = 0x10000, scoped, tag = 'input window, operand 0, single buffered']
    #allocation3 [shape = 's32[1]{0}', space=sflag, size = 0x4, scoped, tag = 'scoped memory for tpu_custom_call.1']
    #allocation4 [shape = 's32[1]{0}', space=sflag, size = 0x4, scoped, tag = 'scoped memory for tpu_custom_call.1']
    #allocation5 [shape = 'u8[32768]{0}', space=vmem, size = 0x8000, scoped, tag = 'input window, operand 1, single buffered']
    #allocation6 [shape = 's32[1]{0}', space=sflag, size = 0x4, scoped, tag = 'scoped memory for tpu_custom_call.1']
    #allocation7 [shape = 'u8[32768]{0}', space=vmem, size = 0x8000, scoped, tag = 'input window, operand 3, single buffered']
    #allocation8 [shape = 'u8[65536]{0}', space=vmem, size = 0x10000, scoped, tag = 'output window, operand 0, single buffered']
    %10 = vsyncpa [#allocation3], 0
    %11 = vsyncpa [#allocation6], 0
    %12 = vsyncpa [#allocation4], 0
    // Predicated region
    $region2: #{tpu_custom_call.1} parent=1 // pred_check
      _
    $region3: #{tpu_custom_call.1} parent=1 // pred_check_branch
      %14 = sbr.rel (0) target = $region5
    $region4: #{tpu_custom_call.1} parent=1 // pred_region
      %s16 = ssub.s32 2048, 2048
      %17 = vsyncadd [#allocation3], %s16
      %s18 = sshll.u32 [#allocation2], 4
      %s19 = int_to_ptr.vmem [resolvable:$true] %s18
      %24 = dma.hbm_to_vmem [thread:$0]  %s0, 2048, %s19, [#allocation3], 128, 128, 8
    $region5: #{tpu_custom_call.1} parent=1 // pred_fallthru
      _
    // Predicated region
    $region6: #{tpu_custom_call.1} parent=1 // pred_check
      _
    $region7: #{tpu_custom_call.1} parent=1 // pred_check_branch
      %26 = sbr.rel (0) target = $region9
    $region8: #{tpu_custom_call.1} parent=1 // pred_region
      %s28 = ssub.s32 1024, 1024
      %29 = vsyncadd [#allocation6], %s28
      %s30 = sshll.u32 [#allocation5], 4
      %s31 = int_to_ptr.vmem [resolvable:$true] %s30
      %36 = dma.hbm_to_vmem [thread:$0]  %s1, 1024, %s31, [#allocation6], 64, 64, 4
    $region9: #{tpu_custom_call.1} parent=1 // pred_fallthru
      _
    // Predicated region
    $region10: #{tpu_custom_call.1} parent=1 // pred_check
      _
    $region11: #{tpu_custom_call.1} parent=1 // pred_check_branch
      %38 = sbr.rel (0) target = $region13
    $region12: #{tpu_custom_call.1} parent=1 // pred_region
      _
    $region13: #{tpu_custom_call.1} parent=1 // pred_fallthru
      _
    // Predicated region
    $region14: #{tpu_custom_call.1} parent=1 // pred_check
      _
    $region15: #{tpu_custom_call.1} parent=1 // pred_check_branch
      %40 = sbr.rel (0) target = $region17
    $region16: #{tpu_custom_call.1} parent=1 // pred_region
      %s42 = ssub.s32 1024, 1024
      %43 = vsyncadd [#allocation6], %s42
      %s44 = sshll.u32 [#allocation7], 4
      %s45 = int_to_ptr.vmem [resolvable:$true] %s44
      %50 = dma.hbm_to_vmem [thread:$0]  %s3, 1024, %s45, [#allocation6], 64, 64, 4
    $region17: #{tpu_custom_call.1} parent=1 // pred_fallthru
      _
    // Predicated region
    $region18: #{tpu_custom_call.1} parent=1 // pred_check
      _
    $region19: #{tpu_custom_call.1} parent=1 // pred_check_branch
      %52 = sbr.rel (0) target = $region21
    $region20: #{tpu_custom_call.1} parent=1 // pred_region
      _
    $region21: #{tpu_custom_call.1} parent=1 // pred_fallthru
      _
    // Predicated region
    $region22: #{tpu_custom_call.1} parent=1 // pred_check
      _
    $region23: #{tpu_custom_call.1} parent=1 // pred_check_branch
      %54 = sbr.rel (0) target = $region25
    $region24: #{tpu_custom_call.1} parent=1 // pred_region
      %55 = dma.done [#allocation3], 2048
    $region25: #{tpu_custom_call.1} parent=1 // pred_fallthru
      _
    // Predicated region
    $region26: #{tpu_custom_call.1} parent=1 // pred_check
      _
    $region27: #{tpu_custom_call.1} parent=1 // pred_check_branch
      %57 = sbr.rel (0) target = $region29
    $region28: #{tpu_custom_call.1} parent=1 // pred_region
      %58 = dma.done [#allocation6], 1024
    $region29: #{tpu_custom_call.1} parent=1 // pred_fallthru
      _
    // Predicated region
    $region30: #{tpu_custom_call.1} parent=1 // pred_check
      _
    $region31: #{tpu_custom_call.1} parent=1 // pred_check_branch
      %60 = sbr.rel (0) target = $region33
    $region32: #{tpu_custom_call.1} parent=1 // pred_region
      %61 = dma.done [#allocation6], 1024
    $region33: #{tpu_custom_call.1} parent=1 // pred_fallthru
      _
    %v63 = vld [vmem:[#allocation2] sm:$0xff]
    %v64 = vld [vmem:[#allocation2 + $0x8] sm:$0xff]
    %v65 = vld [vmem:[#allocation2 + $0x10] sm:$0xff]
    %v66 = vld [vmem:[#allocation2 + $0x18] sm:$0xff]
    %v67 = vld [vmem:[#allocation2 + $0x20] sm:$0xff]
    %v68 = vld [vmem:[#allocation2 + $0x28] sm:$0xff]
    %v69 = vld [vmem:[#allocation2 + $0x30] sm:$0xff]
    %v70 = vld [vmem:[#allocation2 + $0x38] sm:$0xff]
    %v71 = vld [vmem:[#allocation2 + $0x40] sm:$0xff]
    %v72 = vld [vmem:[#allocation2 + $0x48] sm:$0xff]
    %v73 = vld [vmem:[#allocation2 + $0x50] sm:$0xff]
    %v74 = vld [vmem:[#allocation2 + $0x58] sm:$0xff]
    %v75 = vld [vmem:[#allocation2 + $0x60] sm:$0xff]
    %v76 = vld [vmem:[#allocation2 + $0x68] sm:$0xff]
    %v77 = vld [vmem:[#allocation2 + $0x70] sm:$0xff]
    %v78 = vld [vmem:[#allocation2 + $0x78] sm:$0xff]
    %v79 = vpack.c.bf16 %v64, %v63
    %v80 = vpack.c.bf16 %v66, %v65
    %v81 = vpack.c.bf16 %v68, %v67
    %v82 = vpack.c.bf16 %v70, %v69
    %v83 = vpack.c.bf16 %v72, %v71
    %v84 = vpack.c.bf16 %v74, %v73
    %v85 = vpack.c.bf16 %v76, %v75
    %v86 = vpack.c.bf16 %v78, %v77
    %v87 = vld [vmem:[#allocation5] sm:$0xf]
    %v88 = vld [vmem:[#allocation5 + $0x4] sm:$0xf]
    %v89 = vld [vmem:[#allocation5 + $0x8] sm:$0xf]
    %v90 = vld [vmem:[#allocation5 + $0xc] sm:$0xf]
    %v91 = vld [vmem:[#allocation5 + $0x10] sm:$0xf]
    %v92 = vld [vmem:[#allocation5 + $0x14] sm:$0xf]
    %v93 = vld [vmem:[#allocation5 + $0x18] sm:$0xf]
    %v94 = vld [vmem:[#allocation5 + $0x1c] sm:$0xf]
    %v95 = vld [vmem:[#allocation5 + $0x20] sm:$0xf]
    %v96 = vld [vmem:[#allocation5 + $0x24] sm:$0xf]
    %v97 = vld [vmem:[#allocation5 + $0x28] sm:$0xf]
    %v98 = vld [vmem:[#allocation5 + $0x2c] sm:$0xf]
    %v99 = vld [vmem:[#allocation5 + $0x30] sm:$0xf]
    %v100 = vld [vmem:[#allocation5 + $0x34] sm:$0xf]
    %v101 = vld [vmem:[#allocation5 + $0x38] sm:$0xf]
    %v102 = vld [vmem:[#allocation5 + $0x3c] sm:$0xf]
    %v103 = vld [vmem:[%s2] sm:$0x1]
    %v105 = vlaneseq
    %v106 = vshrl.u32 %v105, 7
    %v107 = vsub.s32 0, %v106
    %v108 = vrot.slane %v103, %v107
    %v126 = vunpack.c.l.b16 %v87
    %v127 = vunpack.c.l.b16 %v88
    %v128 = vunpack.c.l.b16 %v89
    %v129 = vunpack.c.l.b16 %v90
    %v130 = vunpack.c.l.b16 %v91
    %v131 = vunpack.c.l.b16 %v92
    %v132 = vunpack.c.l.b16 %v93
    %v133 = vunpack.c.l.b16 %v94
    %v134 = vunpack.c.l.b16 %v95
    %v135 = vunpack.c.l.b16 %v96
    %v136 = vunpack.c.l.b16 %v97
    %v137 = vunpack.c.l.b16 %v98
    %v138 = vunpack.c.l.b16 %v99
    %v139 = vunpack.c.l.b16 %v100
    %v140 = vunpack.c.l.b16 %v101
    %v141 = vunpack.c.l.b16 %v102
    %v142 = vpack.c.b16 %v127, %v126
    %v143 = vpack.c.b16 %v129, %v128
    %v144 = vpack.c.b16 %v131, %v130
    %v145 = vpack.c.b16 %v133, %v132
    %v146 = vpack.c.b16 %v135, %v134
    %v147 = vpack.c.b16 %v137, %v136
    %v148 = vpack.c.b16 %v139, %v138
    %v149 = vpack.c.b16 %v141, %v140
    %158 = vmatprep.subr.bf16.mxu0 0
    %159 = vmatpush1.bf16.msra.mxu0 %v142
    %160 = vmatprep.subr.bf16.mxu0 0
    %161 = vmatpush1.bf16.msra.mxu0 %v143
    %162 = vmatprep.subr.bf16.mxu0 0
    %163 = vmatpush1.bf16.msra.mxu0 %v144
    %164 = vmatprep.subr.bf16.mxu0 0
    %165 = vmatpush1.bf16.msra.mxu0 %v145
    %166 = vmatprep.subr.bf16.mxu0 0
    %167 = vmatpush1.bf16.msra.mxu0 %v146
    %168 = vmatprep.subr.bf16.mxu0 0
    %169 = vmatpush1.bf16.msra.mxu0 %v147
    %170 = vmatprep.subr.bf16.mxu0 0
    %171 = vmatpush1.bf16.msra.mxu0 %v148
    %172 = vmatprep.subr.bf16.mxu0 0
    %173 = vmatpush1.bf16.msra.mxu0 %v149
    %174 = vmatprep.subr.bf16.mxu0 0
    %175 = vmatpush1.bf16.msra.mxu0 0
    %176 = vmatprep.subr.bf16.mxu0 0
    %177 = vmatpush1.bf16.msra.mxu0 0
    %178 = vmatprep.subr.bf16.mxu0 0
    %179 = vmatpush1.bf16.msra.mxu0 0
    %180 = vmatprep.subr.bf16.mxu0 0
    %181 = vmatpush1.bf16.msra.mxu0 0
    %182 = vmatprep.subr.bf16.mxu0 0
    %183 = vmatpush1.bf16.msra.mxu0 0
    %184 = vmatprep.subr.bf16.mxu0 0
    %185 = vmatpush1.bf16.msra.mxu0 0
    %186 = vmatprep.subr.bf16.mxu0 0
    %187 = vmatpush1.bf16.msra.mxu0 0
    %188 = vmatprep.subr.bf16.mxu0 0
    %189 = vmatpush1.bf16.msra.mxu0 0
    %190 = vmatprep.mubr.bf16.mxu0 0
    %191 = vmatmul.mubr.bf16.gmra.mrb[0].mxu0 %v79
    %v192 = vpop.f32.mrb[0].mxu0
    %v193 = vadd.f32 %v108, %v192
    %v194 = vpop.f32.mrb[0].mxu0
    %v195 = vpop.f32.mrb[0].mxu0
    %v196 = vadd.f32 %v108, %v195
    %v197 = vpop.f32.mrb[0].mxu0
    %198 = vmatprep.mubr.bf16.mxu0 0
    %199 = vmatmul.mubr.bf16.gmra.mrb[0].mxu0 %v80
    %v200 = vpop.f32.mrb[0].mxu0
    %v201 = vadd.f32 %v108, %v200
    %v202 = vpop.f32.mrb[0].mxu0
    %v203 = vpop.f32.mrb[0].mxu0
    %v204 = vadd.f32 %v108, %v203
    %v205 = vpop.f32.mrb[0].mxu0
    %206 = vmatprep.mubr.bf16.mxu0 0
    %207 = vmatmul.mubr.bf16.gmra.mrb[0].mxu0 %v81
    %v208 = vpop.f32.mrb[0].mxu0
    %v209 = vadd.f32 %v108, %v208
    %v210 = vpop.f32.mrb[0].mxu0
    %v211 = vpop.f32.mrb[0].mxu0
    %v212 = vadd.f32 %v108, %v211
    %v213 = vpop.f32.mrb[0].mxu0
    %214 = vmatprep.mubr.bf16.mxu0 0
    %215 = vmatmul.mubr.bf16.gmra.mrb[0].mxu0 %v82
    %v216 = vpop.f32.mrb[0].mxu0
    %v217 = vadd.f32 %v108, %v216
    %v218 = vpop.f32.mrb[0].mxu0
    %v219 = vpop.f32.mrb[0].mxu0
    %v220 = vadd.f32 %v108, %v219
    %v221 = vpop.f32.mrb[0].mxu0
    %222 = vmatprep.mubr.bf16.mxu0 0
    %223 = vmatmul.mubr.bf16.gmra.mrb[0].mxu0 %v83
    %v224 = vpop.f32.mrb[0].mxu0
    %v225 = vadd.f32 %v108, %v224
    %v226 = vpop.f32.mrb[0].mxu0
    %v227 = vpop.f32.mrb[0].mxu0
    %v228 = vadd.f32 %v108, %v227
    %v229 = vpop.f32.mrb[0].mxu0
    %230 = vmatprep.mubr.bf16.mxu0 0
    %231 = vmatmul.mubr.bf16.gmra.mrb[0].mxu0 %v84
    %v232 = vpop.f32.mrb[0].mxu0
    %v233 = vadd.f32 %v108, %v232
    %v234 = vpop.f32.mrb[0].mxu0
    %v235 = vpop.f32.mrb[0].mxu0
    %v236 = vadd.f32 %v108, %v235
    %v237 = vpop.f32.mrb[0].mxu0
    %238 = vmatprep.mubr.bf16.mxu0 0
    %239 = vmatmul.mubr.bf16.gmra.mrb[0].mxu0 %v85
    %v240 = vpop.f32.mrb[0].mxu0
    %v241 = vadd.f32 %v108, %v240
    %v242 = vpop.f32.mrb[0].mxu0
    %v243 = vpop.f32.mrb[0].mxu0
    %v244 = vadd.f32 %v108, %v243
    %v245 = vpop.f32.mrb[0].mxu0
    %246 = vmatprep.mubr.bf16.mxu0 0
    %247 = vmatmul.mubr.bf16.gmra.mrb[0].mxu0 %v86
    %v248 = vpop.f32.mrb[0].mxu0
    %v249 = vadd.f32 %v108, %v248
    %v250 = vpop.f32.mrb[0].mxu0
    %v251 = vpop.f32.mrb[0].mxu0
    %v252 = vadd.f32 %v108, %v251
    %v253 = vpop.f32.mrb[0].mxu0
    %254 = vdwg.mxu0
    %v255 = vmul.f32 %v193, 0.5
    %v256 = vmul.f32 %v196, 0.5
    %v257 = vmul.f32 %v201, 0.5
    %v258 = vmul.f32 %v204, 0.5
    %v259 = vmul.f32 %v209, 0.5
    %v260 = vmul.f32 %v212, 0.5
    %v261 = vmul.f32 %v217, 0.5
    %v262 = vmul.f32 %v220, 0.5
    %v263 = vmul.f32 %v225, 0.5
    %v264 = vmul.f32 %v228, 0.5
    %v265 = vmul.f32 %v233, 0.5
    %v266 = vmul.f32 %v236, 0.5
    %v267 = vmul.f32 %v241, 0.5
    %v268 = vmul.f32 %v244, 0.5
    %v269 = vmul.f32 %v249, 0.5
    %v270 = vmul.f32 %v252, 0.5
    %v271 = vmul.f32 %v193, 0.70710677
    %v272 = vmul.f32 %v196, 0.70710677
    %v273 = vmul.f32 %v201, 0.70710677
    %v274 = vmul.f32 %v204, 0.70710677
    %v275 = vmul.f32 %v209, 0.70710677
    %v276 = vmul.f32 %v212, 0.70710677
    %v277 = vmul.f32 %v217, 0.70710677
    %v278 = vmul.f32 %v220, 0.70710677
    %v279 = vmul.f32 %v225, 0.70710677
    %v280 = vmul.f32 %v228, 0.70710677
    %v281 = vmul.f32 %v233, 0.70710677
    %v282 = vmul.f32 %v236, 0.70710677
    %v283 = vmul.f32 %v241, 0.70710677
    %v284 = vmul.f32 %v244, 0.70710677
    %v285 = vmul.f32 %v249, 0.70710677
    %v286 = vmul.f32 %v252, 0.70710677
    %v287 = verf.f32.pop %v271
    %v288 = verf.f32.pop %v272
    %v289 = verf.f32.pop %v273
    %v290 = verf.f32.pop %v274
    %v291 = verf.f32.pop %v275
    %v292 = verf.f32.pop %v276
    %v293 = verf.f32.pop %v277
    %v294 = verf.f32.pop %v278
    %v295 = verf.f32.pop %v279
    %v296 = verf.f32.pop %v280
    %v297 = verf.f32.pop %v281
    %v298 = verf.f32.pop %v282
    %v299 = verf.f32.pop %v283
    %v300 = verf.f32.pop %v284
    %v301 = verf.f32.pop %v285
    %v302 = verf.f32.pop %v286
    %v303 = vadd.f32 %v287, 1.0
    %v304 = vadd.f32 %v288, 1.0
    %v305 = vadd.f32 %v289, 1.0
    %v306 = vadd.f32 %v290, 1.0
    %v307 = vadd.f32 %v291, 1.0
    %v308 = vadd.f32 %v292, 1.0
    %v309 = vadd.f32 %v293, 1.0
    %v310 = vadd.f32 %v294, 1.0
    %v311 = vadd.f32 %v295, 1.0
    %v312 = vadd.f32 %v296, 1.0
    %v313 = vadd.f32 %v297, 1.0
    %v314 = vadd.f32 %v298, 1.0
    %v315 = vadd.f32 %v299, 1.0
    %v316 = vadd.f32 %v300, 1.0
    %v317 = vadd.f32 %v301, 1.0
    %v318 = vadd.f32 %v302, 1.0
    %v319 = vmul.f32 %v255, %v303
    %v320 = vmul.f32 %v256, %v304
    %v321 = vmul.f32 %v257, %v305
    %v322 = vmul.f32 %v258, %v306
    %v323 = vmul.f32 %v259, %v307
    %v324 = vmul.f32 %v260, %v308
    %v325 = vmul.f32 %v261, %v309
    %v326 = vmul.f32 %v262, %v310
    %v327 = vmul.f32 %v263, %v311
    %v328 = vmul.f32 %v264, %v312
    %v329 = vmul.f32 %v265, %v313
    %v330 = vmul.f32 %v266, %v314
    %v331 = vmul.f32 %v267, %v315
    %v332 = vmul.f32 %v268, %v316
    %v333 = vmul.f32 %v269, %v317
    %v334 = vmul.f32 %v270, %v318
    %v335 = vpack.c.bf16 %v320, %v319
    %v336 = vpack.c.bf16 %v322, %v321
    %v337 = vpack.c.bf16 %v324, %v323
    %v338 = vpack.c.bf16 %v326, %v325
    %v339 = vpack.c.bf16 %v328, %v327
    %v340 = vpack.c.bf16 %v330, %v329
    %v341 = vpack.c.bf16 %v332, %v331
    %v342 = vpack.c.bf16 %v334, %v333
    %v343 = vld [vmem:[#allocation7] sm:$0xf]
    %v344 = vld [vmem:[#allocation7 + $0x4] sm:$0xf]
    %v345 = vld [vmem:[#allocation7 + $0x8] sm:$0xf]
    %v346 = vld [vmem:[#allocation7 + $0xc] sm:$0xf]
    %v347 = vld [vmem:[#allocation7 + $0x10] sm:$0xf]
    %v348 = vld [vmem:[#allocation7 + $0x14] sm:$0xf]
    %v349 = vld [vmem:[#allocation7 + $0x18] sm:$0xf]
    %v350 = vld [vmem:[#allocation7 + $0x1c] sm:$0xf]
    %v351 = vld [vmem:[#allocation7 + $0x20] sm:$0xf]
    %v352 = vld [vmem:[#allocation7 + $0x24] sm:$0xf]
    %v353 = vld [vmem:[#allocation7 + $0x28] sm:$0xf]
    %v354 = vld [vmem:[#allocation7 + $0x2c] sm:$0xf]
    %v355 = vld [vmem:[#allocation7 + $0x30] sm:$0xf]
    %v356 = vld [vmem:[#allocation7 + $0x34] sm:$0xf]
    %v357 = vld [vmem:[#allocation7 + $0x38] sm:$0xf]
    %v358 = vld [vmem:[#allocation7 + $0x3c] sm:$0xf]
    %v359 = vld [vmem:[%s4] sm:$0x1]
    %v361 = vlaneseq
    %v362 = vshrl.u32 %v361, 7
    %v363 = vsub.s32 0, %v362
    %v364 = vrot.slane %v359, %v363
    %v382 = vunpack.c.l.b16 %v343
    %v383 = vunpack.c.l.b16 %v344
    %v384 = vunpack.c.l.b16 %v345
    %v385 = vunpack.c.l.b16 %v346
    %v386 = vunpack.c.l.b16 %v347
    %v387 = vunpack.c.l.b16 %v348
    %v388 = vunpack.c.l.b16 %v349
    %v389 = vunpack.c.l.b16 %v350
    %v390 = vunpack.c.l.b16 %v351
    %v391 = vunpack.c.l.b16 %v352
    %v392 = vunpack.c.l.b16 %v353
    %v393 = vunpack.c.l.b16 %v354
    %v394 = vunpack.c.l.b16 %v355
    %v395 = vunpack.c.l.b16 %v356
    %v396 = vunpack.c.l.b16 %v357
    %v397 = vunpack.c.l.b16 %v358
    %v398 = vpack.c.b16 %v383, %v382
    %v399 = vpack.c.b16 %v385, %v384
    %v400 = vpack.c.b16 %v387, %v386
    %v401 = vpack.c.b16 %v389, %v388
    %v402 = vpack.c.b16 %v391, %v390
    %v403 = vpack.c.b16 %v393, %v392
    %v404 = vpack.c.b16 %v395, %v394
    %v405 = vpack.c.b16 %v397, %v396
    %414 = vmatprep.subr.bf16.mxu0 0
    %415 = vmatpush1.bf16.msra.mxu0 %v398
    %416 = vmatprep.subr.bf16.mxu0 0
    %417 = vmatpush1.bf16.msra.mxu0 %v399
    %418 = vmatprep.subr.bf16.mxu0 0
    %419 = vmatpush1.bf16.msra.mxu0 %v400
    %420 = vmatprep.subr.bf16.mxu0 0
    %421 = vmatpush1.bf16.msra.mxu0 %v401
    %422 = vmatprep.subr.bf16.mxu0 0
    %423 = vmatpush1.bf16.msra.mxu0 %v402
    %424 = vmatprep.subr.bf16.mxu0 0
    %425 = vmatpush1.bf16.msra.mxu0 %v403
    %426 = vmatprep.subr.bf16.mxu0 0
    %427 = vmatpush1.bf16.msra.mxu0 %v404
    %428 = vmatprep.subr.bf16.mxu0 0
    %429 = vmatpush1.bf16.msra.mxu0 %v405
    %430 = vmatprep.subr.bf16.mxu0 0
    %431 = vmatpush1.bf16.msra.mxu0 0
    %432 = vmatprep.subr.bf16.mxu0 0
    %433 = vmatpush1.bf16.msra.mxu0 0
    %434 = vmatprep.subr.bf16.mxu0 0
    %435 = vmatpush1.bf16.msra.mxu0 0
    %436 = vmatprep.subr.bf16.mxu0 0
    %437 = vmatpush1.bf16.msra.mxu0 0
    %438 = vmatprep.subr.bf16.mxu0 0
    %439 = vmatpush1.bf16.msra.mxu0 0
    %440 = vmatprep.subr.bf16.mxu0 0
    %441 = vmatpush1.bf16.msra.mxu0 0
    %442 = vmatprep.subr.bf16.mxu0 0
    %443 = vmatpush1.bf16.msra.mxu0 0
    %444 = vmatprep.subr.bf16.mxu0 0
    %445 = vmatpush1.bf16.msra.mxu0 0
    %446 = vmatprep.mubr.bf16.mxu0 0
    %447 = vmatmul.mubr.bf16.gmra.mrb[0].mxu0 %v335
    %v448 = vpop.f32.mrb[0].mxu0
    %v449 = vadd.f32 %v364, %v448
    %v450 = vpop.f32.mrb[0].mxu0
    %v451 = vpop.f32.mrb[0].mxu0
    %v452 = vadd.f32 %v364, %v451
    %v453 = vpop.f32.mrb[0].mxu0
    %454 = vmatprep.mubr.bf16.mxu0 0
    %455 = vmatmul.mubr.bf16.gmra.mrb[0].mxu0 %v336
    %v456 = vpop.f32.mrb[0].mxu0
    %v457 = vadd.f32 %v364, %v456
    %v458 = vpop.f32.mrb[0].mxu0
    %v459 = vpop.f32.mrb[0].mxu0
    %v460 = vadd.f32 %v364, %v459
    %v461 = vpop.f32.mrb[0].mxu0
    %462 = vmatprep.mubr.bf16.mxu0 0
    %463 = vmatmul.mubr.bf16.gmra.mrb[0].mxu0 %v337
    %v464 = vpop.f32.mrb[0].mxu0
    %v465 = vadd.f32 %v364, %v464
    %v466 = vpop.f32.mrb[0].mxu0
    %v467 = vpop.f32.mrb[0].mxu0
    %v468 = vadd.f32 %v364, %v467
    %v469 = vpop.f32.mrb[0].mxu0
    %470 = vmatprep.mubr.bf16.mxu0 0
    %471 = vmatmul.mubr.bf16.gmra.mrb[0].mxu0 %v338
    %v472 = vpop.f32.mrb[0].mxu0
    %v473 = vadd.f32 %v364, %v472
    %v474 = vpop.f32.mrb[0].mxu0
    %v475 = vpop.f32.mrb[0].mxu0
    %v476 = vadd.f32 %v364, %v475
    %v477 = vpop.f32.mrb[0].mxu0
    %478 = vmatprep.mubr.bf16.mxu0 0
    %479 = vmatmul.mubr.bf16.gmra.mrb[0].mxu0 %v339
    %v480 = vpop.f32.mrb[0].mxu0
    %v481 = vadd.f32 %v364, %v480
    %v482 = vpop.f32.mrb[0].mxu0
    %v483 = vpop.f32.mrb[0].mxu0
    %v484 = vadd.f32 %v364, %v483
    %v485 = vpop.f32.mrb[0].mxu0
    %486 = vmatprep.mubr.bf16.mxu0 0
    %487 = vmatmul.mubr.bf16.gmra.mrb[0].mxu0 %v340
    %v488 = vpop.f32.mrb[0].mxu0
    %v489 = vadd.f32 %v364, %v488
    %v490 = vpop.f32.mrb[0].mxu0
    %v491 = vpop.f32.mrb[0].mxu0
    %v492 = vadd.f32 %v364, %v491
    %v493 = vpop.f32.mrb[0].mxu0
    %494 = vmatprep.mubr.bf16.mxu0 0
    %495 = vmatmul.mubr.bf16.gmra.mrb[0].mxu0 %v341
    %v496 = vpop.f32.mrb[0].mxu0
    %v497 = vadd.f32 %v364, %v496
    %v498 = vpop.f32.mrb[0].mxu0
    %v499 = vpop.f32.mrb[0].mxu0
    %v500 = vadd.f32 %v364, %v499
    %v501 = vpop.f32.mrb[0].mxu0
    %502 = vmatprep.mubr.bf16.mxu0 0
    %503 = vmatmul.mubr.bf16.gmra.mrb[0].mxu0 %v342
    %v504 = vpop.f32.mrb[0].mxu0
    %v505 = vadd.f32 %v364, %v504
    %v506 = vpop.f32.mrb[0].mxu0
    %v507 = vpop.f32.mrb[0].mxu0
    %v508 = vadd.f32 %v364, %v507
    %v509 = vpop.f32.mrb[0].mxu0
    %510 = vdwg.mxu0
    %511 = vst [vmem:[#allocation8] sm:$0xff] %v449
    %512 = vst [vmem:[#allocation8 + $0x8] sm:$0xff] %v452
    %513 = vst [vmem:[#allocation8 + $0x10] sm:$0xff] %v457
    %514 = vst [vmem:[#allocation8 + $0x18] sm:$0xff] %v460
    %515 = vst [vmem:[#allocation8 + $0x20] sm:$0xff] %v465
    %516 = vst [vmem:[#allocation8 + $0x28] sm:$0xff] %v468
    %517 = vst [vmem:[#allocation8 + $0x30] sm:$0xff] %v473
    %518 = vst [vmem:[#allocation8 + $0x38] sm:$0xff] %v476
    %519 = vst [vmem:[#allocation8 + $0x40] sm:$0xff] %v481
    %520 = vst [vmem:[#allocation8 + $0x48] sm:$0xff] %v484
    %521 = vst [vmem:[#allocation8 + $0x50] sm:$0xff] %v489
    %522 = vst [vmem:[#allocation8 + $0x58] sm:$0xff] %v492
    %523 = vst [vmem:[#allocation8 + $0x60] sm:$0xff] %v497
    %524 = vst [vmem:[#allocation8 + $0x68] sm:$0xff] %v500
    %525 = vst [vmem:[#allocation8 + $0x70] sm:$0xff] %v505
    %526 = vst [vmem:[#allocation8 + $0x78] sm:$0xff] %v508
    // Predicated region
    $region34: #{tpu_custom_call.1} parent=1 // pred_check
      _
    $region35: #{tpu_custom_call.1} parent=1 // pred_check_branch
      %528 = sbr.rel (0) target = $region37
    $region36: #{tpu_custom_call.1} parent=1 // pred_region
      %s530 = ssub.s32 2048, 2048
      %531 = vsyncadd [#allocation4], %s530
      %s532 = sshll.u32 [#allocation8], 4
      %s533 = int_to_ptr.vmem [resolvable:$true] %s532
      %538 = dma.vmem_to_hbm [thread:$0]  %s533, 2048, %s5, [#allocation4], 128, 128, 8
    $region37: #{tpu_custom_call.1} parent=1 // pred_fallthru
      _
    // Predicated region
    $region38: #{tpu_custom_call.1} parent=1 // pred_check
      _
    $region39: #{tpu_custom_call.1} parent=1 // pred_check_branch
      %540 = sbr.rel (0) target = $region41
    $region40: #{tpu_custom_call.1} parent=1 // pred_region
      %541 = dma.done [#allocation4], 2048
    $region41: #{tpu_custom_call.1} parent=1 // pred_fallthru
      _
    %542 = vsyncpa [#allocation3], 1
    %543 = vsyncpa [#allocation6], 1
    %544 = vsyncpa [#allocation4], 1

</llo_original>
